<compile_context>
chip_gen: v5e
topology: v5e:2x2
jax: 0.10.0
libtpu: 0.0.40
codegen_flags: <defaults>
</compile_context>

<pallas_src>
import jax
import jax.numpy as jnp
from jax.experimental import pallas as pl
from jax.experimental.pallas import tpu as pltpu


def _round_up(x, m):
    return ((x + m - 1) // m) * m


# --------------------------------------------------------------------------
# Stage A: XW = (X * sigmoid(mask)) @ W1        (row-tiled, lane-dense)
# --------------------------------------------------------------------------
def _masked_xw_kernel(x_ref, mask_ref, w1_ref, xw_ref):
    m = jax.nn.sigmoid(mask_ref[...])                       # (1, F) f32, EUP
    xp = (x_ref[...] * m).astype(w1_ref.dtype)              # (TN, F) bf16
    xw = jnp.dot(xp, w1_ref[...], preferred_element_type=jnp.float32)
    xw_ref[...] = xw.astype(xw_ref.dtype)


# --------------------------------------------------------------------------
# Stage B: HW = relu(A @ XW + b1) @ W2
# grid = (row blocks, adj-col reduction blocks); dense W2 matmul fused into
# the finalize so the hidden activation never round-trips to HBM.
# --------------------------------------------------------------------------
def _prop_relu_w2_kernel(adj_ref, xw_ref, b1_ref, w2_ref, hw_ref, acc_ref):
    k = pl.program_id(1)

    @pl.when(k == 0)
    def _():
        acc_ref[...] = jnp.zeros_like(acc_ref)

    acc_ref[...] += jnp.dot(adj_ref[...], xw_ref[...],
                            preferred_element_type=jnp.float32)

    @pl.when(k == pl.num_programs(1) - 1)
    def _():
        h1 = jnp.maximum(acc_ref[...] + b1_ref[...], 0.0)     # (TN, H) f32
        hw = jnp.dot(h1.astype(w2_ref.dtype), w2_ref[...],
                     preferred_element_type=jnp.float32)       # (TN, C) f32
        hw_ref[...] = hw.astype(hw_ref.dtype)


# --------------------------------------------------------------------------
# Stage C: logits = A @ HW + b2 ; probs = softmax(logits)
# (padded class lanes carry b2 = -1e30, so they vanish in the softmax)
# --------------------------------------------------------------------------
def _prop_softmax_kernel(adj_ref, hw_ref, b2_ref, logits_ref, probs_ref,
                         acc_ref):
    k = pl.program_id(1)

    @pl.when(k == 0)
    def _():
        acc_ref[...] = jnp.zeros_like(acc_ref)

    acc_ref[...] += jnp.dot(adj_ref[...], hw_ref[...],
                            preferred_element_type=jnp.float32)

    @pl.when(k == pl.num_programs(1) - 1)
    def _():
        logits = acc_ref[...] + b2_ref[...]
        logits_ref[...] = logits
        mx = jnp.max(logits, axis=-1, keepdims=True)
        e = jnp.exp(logits - mx)
        s = jnp.sum(e, axis=-1, keepdims=True)
        r = pl.reciprocal(s, approx=True)
        r = r * (2.0 - s * r)                 # one Newton refinement step
        probs_ref[...] = e * r


# --------------------------------------------------------------------------
# Wrapper: padding, tiling, pipelined pallas_calls
# --------------------------------------------------------------------------
def perturber_forward(adj_norm, x, mask_logits, w1, b1, w2, b2):
    """Frozen 2-layer GCN forward on sigmoid-masked features.

    adj_norm:    (N, N) f32   symmetric-normalized adjacency (self loops)
    x:           (N, F) f32   node features
    mask_logits: (1, F) f32   perturbation mask (pre-sigmoid)
    w1, b1:      (F, H), (1, H)
    w2, b2:      (H, C), (1, C)
    returns (logits (N, C) f32, probs (N, C) f32)
    """
    N, F = x.shape
    H = w1.shape[1]
    C = w2.shape[1]

    f32 = jnp.float32
    bf16 = jnp.bfloat16

    # ---- lane-dense / tile-aligned padded shapes -------------------------
    F_pad = _round_up(F, 128)
    H_pad = _round_up(H, 128)
    C_pad = _round_up(C, 128)
    N_128 = _round_up(N, 128)
    TN = min(512, N_128)          # adj row tile  (bf16 512x512 tile = 512 KiB)
    TK = TN                       # adj col (reduction) tile
    N_pad = _round_up(N, TN)
    nR = N_pad // TN
    nK = N_pad // TK

    # ---- padded / bf16 operands ------------------------------------------
    adj_p = jnp.zeros((N_pad, N_pad), bf16).at[:N, :N].set(adj_norm.astype(bf16))
    x_p = jnp.zeros((N_pad, F_pad), bf16).at[:N, :F].set(x.astype(bf16))
    mask_p = jnp.zeros((1, F_pad), f32).at[:, :F].set(mask_logits)
    w1_p = jnp.zeros((F_pad, H_pad), bf16).at[:F, :H].set(w1.astype(bf16))
    b1_p = jnp.zeros((1, H_pad), f32).at[:, :H].set(b1)
    w2_p = jnp.zeros((H_pad, C_pad), bf16).at[:H, :C].set(w2.astype(bf16))
    # large negative bias in padded class lanes -> exp() == 0 in softmax
    b2_p = jnp.full((1, C_pad), -1e30, f32).at[:, :C].set(b2)

    row_par = pltpu.CompilerParams(dimension_semantics=("parallel",))
    row_par_red = pltpu.CompilerParams(
        dimension_semantics=("parallel", "arbitrary"))

    # ---- stage A: masked feature transform --------------------------------
    xw = pl.pallas_call(
        _masked_xw_kernel,
        out_shape=jax.ShapeDtypeStruct((N_pad, H_pad), bf16),
        grid=(nR,),
        in_specs=[
            pl.BlockSpec((TN, F_pad), lambda i: (i, 0)),
            pl.BlockSpec((1, F_pad), lambda i: (0, 0)),
            pl.BlockSpec((F_pad, H_pad), lambda i: (0, 0)),
        ],
        out_specs=pl.BlockSpec((TN, H_pad), lambda i: (i, 0)),
        compiler_params=row_par,
    )(x_p, mask_p, w1_p)

    # ---- stage B: first propagation + relu + fused W2 transform -----------
    hw = pl.pallas_call(
        _prop_relu_w2_kernel,
        out_shape=jax.ShapeDtypeStruct((N_pad, C_pad), bf16),
        grid=(nR, nK),
        in_specs=[
            pl.BlockSpec((TN, TK), lambda i, k: (i, k)),
            pl.BlockSpec((TK, H_pad), lambda i, k: (k, 0)),
            pl.BlockSpec((1, H_pad), lambda i, k: (0, 0)),
            pl.BlockSpec((H_pad, C_pad), lambda i, k: (0, 0)),
        ],
        out_specs=pl.BlockSpec((TN, C_pad), lambda i, k: (i, 0)),
        scratch_shapes=[pltpu.VMEM((TN, H_pad), jnp.float32)],
        compiler_params=row_par_red,
    )(adj_p, xw, b1_p, w2_p)

    # ---- stage C: second propagation + softmax -----------------------------
    logits_p, probs_p = pl.pallas_call(
        _prop_softmax_kernel,
        out_shape=(jax.ShapeDtypeStruct((N_pad, C_pad), jnp.float32),
                   jax.ShapeDtypeStruct((N_pad, C_pad), jnp.float32)),
        grid=(nR, nK),
        in_specs=[
            pl.BlockSpec((TN, TK), lambda i, k: (i, k)),
            pl.BlockSpec((TK, C_pad), lambda i, k: (k, 0)),
            pl.BlockSpec((1, C_pad), lambda i, k: (0, 0)),
        ],
        out_specs=(pl.BlockSpec((TN, C_pad), lambda i, k: (i, 0)),
                   pl.BlockSpec((TN, C_pad), lambda i, k: (i, 0))),
        scratch_shapes=[pltpu.VMEM((TN, C_pad), jnp.float32)],
        compiler_params=row_par_red,
    )(adj_p, hw, b2_p)

    return logits_p[:N, :C], probs_p[:N, :C]


# --------------------------------------------------------------------------
# Pure-JAX f32 reference (original, unpadded semantics)
# --------------------------------------------------------------------------
def _reference(adj_norm, x, mask_logits, w1, b1, w2, b2):
    m = jax.nn.sigmoid(mask_logits)
    h1 = jax.nn.relu(adj_norm @ ((x * m) @ w1) + b1)
    logits = adj_norm @ (h1 @ w2) + b2
    return logits, jax.nn.softmax(logits, axis=-1)


if __name__ == "__main__":
    # Small, deterministic problem: 64 nodes, 32 features, 32 hidden, 8 classes.
    N, F, H, C = 64, 32, 32, 8
    key = jax.random.PRNGKey(0)
    k_x, k_a, k_m, k_w1, k_b1, k_w2, k_b2 = jax.random.split(key, 7)

    x = jax.random.normal(k_x, (N, F), dtype=jnp.float32)

    # Random sparse-ish graph -> symmetric normalized adjacency with self loops.
    a_rand = jax.random.uniform(k_a, (N, N))
    adj = (a_rand < 0.1).astype(jnp.float32)
    adj = jnp.maximum(adj, adj.T)
    adj = adj + jnp.eye(N, dtype=jnp.float32)
    deg = jnp.sum(adj, axis=1)
    d_inv_sqrt = 1.0 / jnp.sqrt(deg)
    adj_norm = adj * d_inv_sqrt[:, None] * d_inv_sqrt[None, :]

    mask_logits = jax.random.normal(k_m, (1, F), dtype=jnp.float32)
    w1 = jax.random.normal(k_w1, (F, H), dtype=jnp.float32) * (1.0 / jnp.sqrt(F))
    b1 = jax.random.normal(k_b1, (1, H), dtype=jnp.float32) * 0.01
    w2 = jax.random.normal(k_w2, (H, C), dtype=jnp.float32) * (1.0 / jnp.sqrt(H))
    b2 = jax.random.normal(k_b2, (1, C), dtype=jnp.float32) * 0.01

    logits, probs = perturber_forward(adj_norm, x, mask_logits, w1, b1, w2, b2)
    logits = jax.block_until_ready(logits)
    probs = jax.block_until_ready(probs)

    ref_logits, ref_probs = _reference(adj_norm, x, mask_logits, w1, b1, w2, b2)

    # bf16 operands (f32 accumulation) -> compare against the f32 reference
    # with bf16-appropriate tolerances.
    assert logits.shape == (N, C) and probs.shape == (N, C)
    assert jnp.allclose(logits, ref_logits, atol=1e-1, rtol=5e-2)
    assert jnp.allclose(probs, ref_probs, atol=2e-2, rtol=5e-2)
    assert jnp.allclose(jnp.sum(probs, axis=-1), 1.0, atol=1e-3)
    assert bool(jnp.all(jnp.isfinite(logits))) and bool(jnp.all(jnp.isfinite(probs)))

    print("KERNEL_OK")
</pallas_src>

<mosaic_0001>
module attributes {stable_mosaic.version = 11 : i64} {
  func.func @_masked_xw_kernel(%arg0: i32, %arg1: memref<128x128xbf16, #tpu.memory_space<vmem>>, %arg2: memref<1x128xf32, #tpu.memory_space<vmem>>, %arg3: memref<128x128xbf16, #tpu.memory_space<vmem>>, %arg4: memref<128x128xbf16, #tpu.memory_space<vmem>>) attributes {dimension_semantics = [#tpu.dimension_semantics<parallel>], iteration_bounds = array<i64: 1>, scalar_prefetch = 0 : i64, scratch_operands = 0 : i64, tpu.core_type = #tpu.core_type<tc>, window_params = [{transform_indices = @transform_0, window_bounds = array<i64: 128, 128>}, {pipeline_mode = #tpu.pipeline_mode<synchronous>, transform_indices = @transform_1, window_bounds = array<i64: 1, 128>}, {pipeline_mode = #tpu.pipeline_mode<synchronous>, transform_indices = @transform_2, window_bounds = array<i64: 128, 128>}, {transform_indices = @transform_3, window_bounds = array<i64: 128, 128>}]} {
    %c0 = arith.constant 0 : index
    %c0_0 = arith.constant 0 : index
    %0 = vector.load %arg2[%c0, %c0_0] : memref<1x128xf32, #tpu.memory_space<vmem>>, vector<1x128xf32>
    %1 = arith.negf %0 : vector<1x128xf32>
    %2 = math.exp %1 : vector<1x128xf32>
    %cst = arith.constant 1.000000e+00 : f32
    %3 = vector.broadcast %cst : f32 to vector<1x128xf32>
    %4 = arith.addf %3, %2 : vector<1x128xf32>
    %5 = arith.divf %3, %4 : vector<1x128xf32>
    %c0_1 = arith.constant 0 : index
    %c0_2 = arith.constant 0 : index
    %6 = vector.load %arg1[%c0_1, %c0_2] : memref<128x128xbf16, #tpu.memory_space<vmem>>, vector<128x128xbf16>
    %7 = arith.extf %6 : vector<128x128xbf16> to vector<128x128xf32>
    %8 = vector.broadcast %5 : vector<1x128xf32> to vector<128x128xf32>
    %9 = arith.mulf %7, %8 : vector<128x128xf32>
    %10 = arith.truncf %9 : vector<128x128xf32> to vector<128x128xbf16>
    %c0_3 = arith.constant 0 : index
    %c0_4 = arith.constant 0 : index
    %11 = vector.load %arg3[%c0_3, %c0_4] : memref<128x128xbf16, #tpu.memory_space<vmem>>, vector<128x128xbf16>
    %cst_5 = arith.constant dense<0.000000e+00> : vector<128x128xf32>
    %12 = tpu.matmul %10, %11, %cst_5 {dimension_numbers = #tpu.dot_dimension_numbers<[1], [0], [0], [1], [0, 0, 1, 1], [], []>} : vector<128x128xbf16>, vector<128x128xbf16>, vector<128x128xf32> -> vector<128x128xf32>
    %13 = arith.truncf %12 : vector<128x128xf32> to vector<128x128xbf16>
    %c0_6 = arith.constant 0 : index
    %c0_7 = arith.constant 0 : index
    %14 = vector.load %arg4[%c0_6, %c0_7] : memref<128x128xbf16, #tpu.memory_space<vmem>>, vector<128x128xbf16>
    tpu.vector_store %arg4[%c0_6, %c0_7], %13 {strides = array<i32>} : memref<128x128xbf16, #tpu.memory_space<vmem>>, vector<128x128xbf16>,
    return
  }
  func.func @transform_0(%arg0: i32) -> (i32, i32) {
    %c0_i32 = arith.constant 0 : i32
    %c0_i32_0 = arith.constant 0 : i32
    return %arg0, %c0_i32 : i32, i32
  }
  func.func @transform_1(%arg0: i32) -> (i32, i32) {
    %c0_i32 = arith.constant 0 : i32
    %c0_i32_0 = arith.constant 0 : i32
    %c0_i32_1 = arith.constant 0 : i32
    return %c0_i32, %c0_i32_0 : i32, i32
  }
  func.func @transform_2(%arg0: i32) -> (i32, i32) {
    %c0_i32 = arith.constant 0 : i32
    %c0_i32_0 = arith.constant 0 : i32
    %c0_i32_1 = arith.constant 0 : i32
    return %c0_i32, %c0_i32_0 : i32, i32
  }
  func.func @transform_3(%arg0: i32) -> (i32, i32) {
    %c0_i32 = arith.constant 0 : i32
    %c0_i32_0 = arith.constant 0 : i32
    return %arg0, %c0_i32 : i32, i32
  }
}

</mosaic_0001>

<llo_original>
// kernel: tpu_custom_call.1
$region0: #{tpu_custom_call.1}
  #allocation0 [shape = 'u32[]', space=smem, size = 0x4, offset = 0x4, fixed_abs, tag = 'smem constant byte address 0x4 - core index']
  #allocation1 [shape = 'u32[72,128]{1,0:T(1,128)}', space=vmem, size = 0x9000, scoped, tag = 'internal scratch']
  %s0 = inlined_call_operand.hbm [shape: bf16[128,128], index: 0, kind: input, shape index: {}]
  %s1 = inlined_call_operand.hbm [shape: f32[1,128], index: 1, kind: input, shape index: {}]
  %s2 = inlined_call_operand.hbm [shape: bf16[128,128], index: 2, kind: input, shape index: {}]
  %s3 = inlined_call_operand.hbm [shape: bf16[128,128], index: 3, kind: output, shape index: {}]
  %s4 = sld [smem:[#allocation0]]
  $region34: #{tpu_custom_call.1} parent=0
    _
  %s6 = ssub.s32 1, %s4
  %s7 = scalar_select 0, %s6, %s4
  $region1: #{tpu_custom_call.1} parent=0
    #allocation2 [shape = 'u8[32768]{0}', space=vmem, size = 0x8000, scoped, tag = 'input window, operand 0, single buffered']
    #allocation3 [shape = 's32[1]{0}', space=sflag, size = 0x4, scoped, tag = 'scoped memory for tpu_custom_call.1']
    #allocation4 [shape = 's32[1]{0}', space=sflag, size = 0x4, scoped, tag = 'scoped memory for tpu_custom_call.1']
    #allocation5 [shape = 'u8[512]{0}', space=vmem, size = 0x400, scoped, tag = 'input window, operand 1, single buffered']
    #allocation6 [shape = 's32[1]{0}', space=sflag, size = 0x4, scoped, tag = 'scoped memory for tpu_custom_call.1']
    #allocation7 [shape = 'u8[32768]{0}', space=vmem, size = 0x8000, scoped, tag = 'input window, operand 2, single buffered']
    #allocation8 [shape = 'u8[32768]{0}', space=vmem, size = 0x8000, scoped, tag = 'output window, operand 0, single buffered']
    %8 = vsyncpa [#allocation3], 0
    %9 = vsyncpa [#allocation6], 0
    %10 = vsyncpa [#allocation4], 0
    // Predicated region
    $region2: #{tpu_custom_call.1} parent=1 // pred_check
      _
    $region3: #{tpu_custom_call.1} parent=1 // pred_check_branch
      %12 = sbr.rel (0) target = $region5
    $region4: #{tpu_custom_call.1} parent=1 // pred_region
      %14 = vsyncadd [#allocation3], 0
      %s15 = sshll.u32 %s0, 4
      %s16 = int_to_ptr.hbm [resolvable:$true] %s15
      %s17 = sshll.u32 [#allocation2], 4
      %s18 = int_to_ptr.vmem [resolvable:$true] %s17
      %23 = dma.hbm_to_vmem [thread:$0]  %s16, 1024, %s18, [#allocation3], 64, 64, 4
    $region5: #{tpu_custom_call.1} parent=1 // pred_fallthru
      _
    // Predicated region
    $region6: #{tpu_custom_call.1} parent=1 // pred_check
      _
    $region7: #{tpu_custom_call.1} parent=1 // pred_check_branch
      %25 = sbr.rel (0) target = $region9
    $region8: #{tpu_custom_call.1} parent=1 // pred_region
      %27 = vsyncadd [#allocation6], 0
      %s29 = sshll.u32 %s1, 4
      %s30 = int_to_ptr.hbm [resolvable:$true] %s29
      %s31 = sshll.u32 [#allocation5], 4
      %s32 = int_to_ptr.vmem [resolvable:$true] %s31
      %34 = dma.hbm_to_vmem [thread:$0]  %s30, 16, %s32, [#allocation6]
    $region9: #{tpu_custom_call.1} parent=1 // pred_fallthru
      _
    // Predicated region
    $region10: #{tpu_custom_call.1} parent=1 // pred_check
      _
    $region11: #{tpu_custom_call.1} parent=1 // pred_check_branch
      %36 = sbr.rel (0) target = $region13
    $region12: #{tpu_custom_call.1} parent=1 // pred_region
      %38 = vsyncadd [#allocation6], 0
      %s39 = sshll.u32 %s2, 4
      %s40 = int_to_ptr.hbm [resolvable:$true] %s39
      %s41 = sshll.u32 [#allocation7], 4
      %s42 = int_to_ptr.vmem [resolvable:$true] %s41
      %47 = dma.hbm_to_vmem [thread:$0]  %s40, 1024, %s42, [#allocation6], 64, 64, 4
    $region13: #{tpu_custom_call.1} parent=1 // pred_fallthru
      _
    // Predicated region
    $region14: #{tpu_custom_call.1} parent=1 // pred_check
      _
    $region15: #{tpu_custom_call.1} parent=1 // pred_check_branch
      %49 = sbr.rel (0) target = $region17
    $region16: #{tpu_custom_call.1} parent=1 // pred_region
      %51 = dma.done [#allocation3], 1024
    $region17: #{tpu_custom_call.1} parent=1 // pred_fallthru
      _
    // Predicated region
    $region18: #{tpu_custom_call.1} parent=1 // pred_check
      _
    $region19: #{tpu_custom_call.1} parent=1 // pred_check_branch
      %53 = sbr.rel (0) target = $region21
    $region20: #{tpu_custom_call.1} parent=1 // pred_region
      %55 = dma.done [#allocation6], 16
    $region21: #{tpu_custom_call.1} parent=1 // pred_fallthru
      _
    // Predicated region
    $region22: #{tpu_custom_call.1} parent=1 // pred_check
      _
    $region23: #{tpu_custom_call.1} parent=1 // pred_check_branch
      %57 = sbr.rel (0) target = $region25
    $region24: #{tpu_custom_call.1} parent=1 // pred_region
      %59 = dma.done [#allocation6], 1024
    $region25: #{tpu_custom_call.1} parent=1 // pred_fallthru
      _
    %v60 = vld [vmem:[#allocation5] sm:$0x1]
    %v61 = vxor.u32 %v60, 2147483648
    %v62 = vmul.f32 %v61, 1.442695
    %v63 = vpow.pop %v62
    %v64 = vadd.f32 %v63, 1.0
    %v65 = vrcp.pop %v64
    %v66 = vmul.f32 %v64, %v65
    %v67 = vsub.f32 1.0, %v66
    %v68 = vmul.f32 %v65, %v67
    %v69 = vadd.f32 %v65, %v68
    %vm70 = vweird.f32 %v64
    %vm71 = vweird.f32 %v65
    %vm72 = vmor %vm70, %vm71
    %v73 = vsel %vm72, %v65, %v69
    %v74 = vand.u32 2147483647, %v64
    %vm75 = vcmp.eq.f32.partialorder %v74, 8.507059e+37
    %v76 = vand.u32 %v64, 2147483648
    %v77 = vor.u32 1.1754944e-38, %v76
    %v78 = vsel %vm75, %v77, %v73
    %v79 = vmul.f32 1.0, %v78
    %v80 = vld [vmem:[#allocation2] sm:$0xf]
    %v81 = vld [vmem:[#allocation2 + $0x4] sm:$0xf]
    %v82 = vld [vmem:[#allocation2 + $0x8] sm:$0xf]
    %v83 = vld [vmem:[#allocation2 + $0xc] sm:$0xf]
    %v84 = vld [vmem:[#allocation2 + $0x10] sm:$0xf]
    %v85 = vld [vmem:[#allocation2 + $0x14] sm:$0xf]
    %v86 = vld [vmem:[#allocation2 + $0x18] sm:$0xf]
    %v87 = vld [vmem:[#allocation2 + $0x1c] sm:$0xf]
    %v88 = vld [vmem:[#allocation2 + $0x20] sm:$0xf]
    %v89 = vld [vmem:[#allocation2 + $0x24] sm:$0xf]
    %v90 = vld [vmem:[#allocation2 + $0x28] sm:$0xf]
    %v91 = vld [vmem:[#allocation2 + $0x2c] sm:$0xf]
    %v92 = vld [vmem:[#allocation2 + $0x30] sm:$0xf]
    %v93 = vld [vmem:[#allocation2 + $0x34] sm:$0xf]
    %v94 = vld [vmem:[#allocation2 + $0x38] sm:$0xf]
    %v95 = vld [vmem:[#allocation2 + $0x3c] sm:$0xf]
    %v96 = vunpack.c.l.bf16 %v80
    %v97 = vunpack.c.l.bf16 %v81
    %v98 = vunpack.c.l.bf16 %v82
    %v99 = vunpack.c.l.bf16 %v83
    %v100 = vunpack.c.l.bf16 %v84
    %v101 = vunpack.c.l.bf16 %v85
    %v102 = vunpack.c.l.bf16 %v86
    %v103 = vunpack.c.l.bf16 %v87
    %v104 = vunpack.c.l.bf16 %v88
    %v105 = vunpack.c.l.bf16 %v89
    %v106 = vunpack.c.l.bf16 %v90
    %v107 = vunpack.c.l.bf16 %v91
    %v108 = vunpack.c.l.bf16 %v92
    %v109 = vunpack.c.l.bf16 %v93
    %v110 = vunpack.c.l.bf16 %v94
    %v111 = vunpack.c.l.bf16 %v95
    %v113 = vperm.slane %v79, 0
    %v115 = vmul.f32 %v96, %v113
    %v116 = vmul.f32 %v97, %v113
    %v117 = vmul.f32 %v98, %v113
    %v118 = vmul.f32 %v99, %v113
    %v119 = vmul.f32 %v100, %v113
    %v120 = vmul.f32 %v101, %v113
    %v121 = vmul.f32 %v102, %v113
    %v122 = vmul.f32 %v103, %v113
    %v123 = vmul.f32 %v104, %v113
    %v124 = vmul.f32 %v105, %v113
    %v125 = vmul.f32 %v106, %v113
    %v126 = vmul.f32 %v107, %v113
    %v127 = vmul.f32 %v108, %v113
    %v128 = vmul.f32 %v109, %v113
    %v129 = vmul.f32 %v110, %v113
    %v130 = vmul.f32 %v111, %v113
    %v131 = vpack.c.bf16 %v116, %v115
    %v132 = vpack.c.bf16 %v118, %v117
    %v133 = vpack.c.bf16 %v120, %v119
    %v134 = vpack.c.bf16 %v122, %v121
    %v135 = vpack.c.bf16 %v124, %v123
    %v136 = vpack.c.bf16 %v126, %v125
    %v137 = vpack.c.bf16 %v128, %v127
    %v138 = vpack.c.bf16 %v130, %v129
    %v139 = vld [vmem:[#allocation7] sm:$0xf]
    %v140 = vld [vmem:[#allocation7 + $0x4] sm:$0xf]
    %v141 = vld [vmem:[#allocation7 + $0x8] sm:$0xf]
    %v142 = vld [vmem:[#allocation7 + $0xc] sm:$0xf]
    %v143 = vld [vmem:[#allocation7 + $0x10] sm:$0xf]
    %v144 = vld [vmem:[#allocation7 + $0x14] sm:$0xf]
    %v145 = vld [vmem:[#allocation7 + $0x18] sm:$0xf]
    %v146 = vld [vmem:[#allocation7 + $0x1c] sm:$0xf]
    %v147 = vld [vmem:[#allocation7 + $0x20] sm:$0xf]
    %v148 = vld [vmem:[#allocation7 + $0x24] sm:$0xf]
    %v149 = vld [vmem:[#allocation7 + $0x28] sm:$0xf]
    %v150 = vld [vmem:[#allocation7 + $0x2c] sm:$0xf]
    %v151 = vld [vmem:[#allocation7 + $0x30] sm:$0xf]
    %v152 = vld [vmem:[#allocation7 + $0x34] sm:$0xf]
    %v153 = vld [vmem:[#allocation7 + $0x38] sm:$0xf]
    %v154 = vld [vmem:[#allocation7 + $0x3c] sm:$0xf]
    %v171 = vunpack.c.l.b16 %v139
    %v172 = vunpack.c.l.b16 %v140
    %v173 = vunpack.c.l.b16 %v141
    %v174 = vunpack.c.l.b16 %v142
    %v175 = vunpack.c.l.b16 %v143
    %v176 = vunpack.c.l.b16 %v144
    %v177 = vunpack.c.l.b16 %v145
    %v178 = vunpack.c.l.b16 %v146
    %v179 = vunpack.c.l.b16 %v147
    %v180 = vunpack.c.l.b16 %v148
    %v181 = vunpack.c.l.b16 %v149
    %v182 = vunpack.c.l.b16 %v150
    %v183 = vunpack.c.l.b16 %v151
    %v184 = vunpack.c.l.b16 %v152
    %v185 = vunpack.c.l.b16 %v153
    %v186 = vunpack.c.l.b16 %v154
    %v187 = vpack.c.b16 %v172, %v171
    %v188 = vpack.c.b16 %v174, %v173
    %v189 = vpack.c.b16 %v176, %v175
    %v190 = vpack.c.b16 %v178, %v177
    %v191 = vpack.c.b16 %v180, %v179
    %v192 = vpack.c.b16 %v182, %v181
    %v193 = vpack.c.b16 %v184, %v183
    %v194 = vpack.c.b16 %v186, %v185
    %203 = vmatpush.bf16.msra.mxu0 %v194
    %204 = vmatpush.bf16.msra.mxu0 %v193
    %205 = vmatpush.bf16.msra.mxu0 %v192
    %206 = vmatpush.bf16.msra.mxu0 %v191
    %207 = vmatpush.bf16.msra.mxu0 %v190
    %208 = vmatpush.bf16.msra.mxu0 %v189
    %209 = vmatpush.bf16.msra.mxu0 %v188
    %210 = vmatpush.bf16.msra.mxu0 %v187
    %211 = vmatmul.bf16.gmra.mxu0 %v131
    %v212 = vpop.f32.mrf.mxu0
    %v213 = vadd.f32 0.0, %v212
    %v214 = vpop.f32.mrf.mxu0
    %v215 = vadd.f32 0.0, %v214
    %216 = vmatmul.bf16.gmra.mxu0 %v132
    %v217 = vpop.f32.mrf.mxu0
    %v218 = vadd.f32 0.0, %v217
    %v219 = vpop.f32.mrf.mxu0
    %v220 = vadd.f32 0.0, %v219
    %221 = vmatmul.bf16.gmra.mxu0 %v133
    %v222 = vpop.f32.mrf.mxu0
    %v223 = vadd.f32 0.0, %v222
    %v224 = vpop.f32.mrf.mxu0
    %v225 = vadd.f32 0.0, %v224
    %226 = vmatmul.bf16.gmra.mxu0 %v134
    %v227 = vpop.f32.mrf.mxu0
    %v228 = vadd.f32 0.0, %v227
    %v229 = vpop.f32.mrf.mxu0
    %v230 = vadd.f32 0.0, %v229
    %231 = vmatmul.bf16.gmra.mxu0 %v135
    %v232 = vpop.f32.mrf.mxu0
    %v233 = vadd.f32 0.0, %v232
    %v234 = vpop.f32.mrf.mxu0
    %v235 = vadd.f32 0.0, %v234
    %236 = vmatmul.bf16.gmra.mxu0 %v136
    %v237 = vpop.f32.mrf.mxu0
    %v238 = vadd.f32 0.0, %v237
    %v239 = vpop.f32.mrf.mxu0
    %v240 = vadd.f32 0.0, %v239
    %241 = vmatmul.bf16.gmra.mxu0 %v137
    %v242 = vpop.f32.mrf.mxu0
    %v243 = vadd.f32 0.0, %v242
    %v244 = vpop.f32.mrf.mxu0
    %v245 = vadd.f32 0.0, %v244
    %246 = vmatmul.bf16.gmra.mxu0 %v138
    %v247 = vpop.f32.mrf.mxu0
    %v248 = vadd.f32 0.0, %v247
    %v249 = vpop.f32.mrf.mxu0
    %v250 = vadd.f32 0.0, %v249
    %251 = vdwg.mxu0
    %v252 = vpack.c.bf16 %v213, %v213
    %v253 = vpack.c.bf16 %v215, %v215
    %v254 = vpack.c.bf16 %v218, %v218
    %v255 = vpack.c.bf16 %v220, %v220
    %v256 = vpack.c.bf16 %v223, %v223
    %v257 = vpack.c.bf16 %v225, %v225
    %v258 = vpack.c.bf16 %v228, %v228
    %v259 = vpack.c.bf16 %v230, %v230
    %v260 = vpack.c.bf16 %v233, %v233
    %v261 = vpack.c.bf16 %v235, %v235
    %v262 = vpack.c.bf16 %v238, %v238
    %v263 = vpack.c.bf16 %v240, %v240
    %v264 = vpack.c.bf16 %v243, %v243
    %v265 = vpack.c.bf16 %v245, %v245
    %v266 = vpack.c.bf16 %v248, %v248
    %v267 = vpack.c.bf16 %v250, %v250
    %268 = vst [vmem:[#allocation8] sm:$0xf] %v252
    %269 = vst [vmem:[#allocation8 + $0x4] sm:$0xf] %v253
    %270 = vst [vmem:[#allocation8 + $0x8] sm:$0xf] %v254
    %271 = vst [vmem:[#allocation8 + $0xc] sm:$0xf] %v255
    %272 = vst [vmem:[#allocation8 + $0x10] sm:$0xf] %v256
    %273 = vst [vmem:[#allocation8 + $0x14] sm:$0xf] %v257
    %274 = vst [vmem:[#allocation8 + $0x18] sm:$0xf] %v258
    %275 = vst [vmem:[#allocation8 + $0x1c] sm:$0xf] %v259
    %276 = vst [vmem:[#allocation8 + $0x20] sm:$0xf] %v260
    %277 = vst [vmem:[#allocation8 + $0x24] sm:$0xf] %v261
    %278 = vst [vmem:[#allocation8 + $0x28] sm:$0xf] %v262
    %279 = vst [vmem:[#allocation8 + $0x2c] sm:$0xf] %v263
    %280 = vst [vmem:[#allocation8 + $0x30] sm:$0xf] %v264
    %281 = vst [vmem:[#allocation8 + $0x34] sm:$0xf] %v265
    %282 = vst [vmem:[#allocation8 + $0x38] sm:$0xf] %v266
    %283 = vst [vmem:[#allocation8 + $0x3c] sm:$0xf] %v267
    // Predicated region
    $region26: #{tpu_custom_call.1} parent=1 // pred_check
      _
    $region27: #{tpu_custom_call.1} parent=1 // pred_check_branch
      %285 = sbr.rel (0) target = $region29
    $region28: #{tpu_custom_call.1} parent=1 // pred_region
      %287 = vsyncadd [#allocation4], 0
      %s288 = sshll.u32 [#allocation8], 4
      %s289 = int_to_ptr.vmem [resolvable:$true] %s288
      %s290 = sshll.u32 %s3, 4
      %s291 = int_to_ptr.hbm [resolvable:$true] %s290
      %296 = dma.vmem_to_hbm [thread:$0]  %s289, 1024, %s291, [#allocation4], 64, 64, 4
    $region29: #{tpu_custom_call.1} parent=1 // pred_fallthru
      _
    // Predicated region
    $region30: #{tpu_custom_call.1} parent=1 // pred_check
      _
    $region31: #{tpu_custom_call.1} parent=1 // pred_check_branch
      %298 = sbr.rel (0) target = $region33
    $region32: #{tpu_custom_call.1} parent=1 // pred_region
      %300 = dma.done [#allocation4], 1024
    $region33: #{tpu_custom_call.1} parent=1 // pred_fallthru
      _
    %301 = vsyncpa [#allocation3], 1
    %302 = vsyncpa [#allocation6], 1
    %303 = vsyncpa [#allocation4], 1

</llo_original>
